<compile_context>
chip_gen: v7x
topology: tpu7x:2x2x1
jax: 0.10.0
libtpu: 0.0.40
codegen_flags: <defaults>
</compile_context>

<pallas_src>
import functools

import jax
import jax.numpy as jnp
import numpy as np
from jax.experimental import pallas as pl
from jax.experimental.pallas import tpu as pltpu


def _round_up(x: int, m: int) -> int:
    return (x + m - 1) // m * m


def char_embed_kernel(seed_ref, ids_ref, table_ref, out_ref, *, drop_rate, training):
    # ids_ref:   (TN, 1)  int32 token ids for this tile
    # table_ref: (Vp, D)  full (vocab-padded) embedding table, resident in VMEM
    # out_ref:   (TN, D)  output embeddings for this tile
    ids = ids_ref[...]                                    # (TN, 1)
    tn = ids.shape[0]
    vp = table_ref.shape[0]

    # one-hot(ids) @ table  ==  table[ids]   (MXU, exact in f32; K = Vp = 128k)
    iota_v = jax.lax.broadcasted_iota(jnp.int32, (tn, vp), 1)
    onehot = (ids == iota_v).astype(table_ref.dtype)      # (TN, Vp)
    emb = jnp.dot(onehot, table_ref[...],
                  preferred_element_type=jnp.float32)     # (TN, D) f32

    if training and drop_rate >= 1.0:
        emb = jnp.zeros_like(emb)
    elif training and drop_rate > 0.0:
        # Inverted dropout from a stateless per-element integer hash.
        # Hash input = global flattened element index mixed with the seed, so
        # the mask is independent of tiling and distinct seeds give
        # independent streams (fixes the seed+program_id overlap concern).
        d = emb.shape[1]
        base = pl.program_id(0) * tn                       # first global row of tile
        row = jax.lax.broadcasted_iota(jnp.int32, (tn, d), 0) + base
        col = jax.lax.broadcasted_iota(jnp.int32, (tn, d), 1)
        x = (row * d + col).astype(jnp.uint32)
        seed_u = seed_ref[0].astype(jnp.uint32)
        x = x ^ (seed_u * jnp.uint32(0x9E3779B9))
        # murmur3 finalizer (good avalanche, pure 32-bit VPU integer ops)
        x = x ^ (x >> 16)
        x = x * jnp.uint32(0x85EBCA6B)
        x = x ^ (x >> 13)
        x = x * jnp.uint32(0xC2B2AE35)
        x = x ^ (x >> 16)
        # Drop iff hash < p * 2^32: pure integer compare, no u32->f32 convert.
        thresh = jnp.uint32(min(int(round(drop_rate * float(2 ** 32))), 2 ** 32 - 1))
        keep = x >= thresh
        emb = jnp.where(keep, emb * np.float32(1.0 / (1.0 - drop_rate)), 0.0)

    out_ref[...] = emb.astype(out_ref.dtype)


def char_embeddings_forward(words_seq, table, *, drop_rate=0.5, training=False,
                            seed=0, token_tile=1024):
    """Pallas equivalent of CharEmbeddings.forward (eval mode by default)."""
    B, L = words_seq.shape
    V, D = table.shape
    N = B * L

    # Pad vocab up to a multiple of 128 lanes; zero rows contribute nothing to
    # the one-hot matmul, so this is a free lane-density / MXU-fill win.
    Vp = _round_up(max(V, 1), 128)
    if Vp != V:
        table = jnp.pad(table, ((0, Vp - V), (0, 0)))

    # Token tile: as large as requested (amortizes the ~0.35us per-grid-step
    # overhead), multiple of 8 sublanes, never bigger than the problem.
    tile = max(8, min(_round_up(int(token_tile), 8), _round_up(N, 8)))
    n_pad = _round_up(N, tile)
    grid = n_pad // tile

    ids = words_seq.reshape(N).astype(jnp.int32)
    if n_pad != N:
        ids = jnp.pad(ids, (0, n_pad - N))        # pad rows hit row 0, sliced off below
    ids = ids.reshape(n_pad, 1)
    seed_arr = jnp.array([seed], dtype=jnp.int32)

    kernel = functools.partial(char_embed_kernel,
                               drop_rate=float(drop_rate),
                               training=bool(training))

    # VMEM budget (correct lane-padded accounting, 2x headroom, 48 MiB cap so
    # it always leaves headroom on v7x's 64 MiB physical VMEM):
    itemsize = jnp.dtype(table.dtype).itemsize
    vmem_need = (2 * Vp * D * itemsize           # resident table (double-buffered)
                 + 2 * tile * 128 * 4            # (tile,1) ids blocks pad to 128 lanes
                 + 2 * tile * D * itemsize       # output tiles
                 + tile * Vp * 4                 # one-hot intermediate
                 + 4 * tile * D * 4)             # f32 emb / dropout intermediates
    vmem_limit = int(min(48 * 1024 * 1024, max(4 * 1024 * 1024, 2 * vmem_need)))

    out = pl.pallas_call(
        kernel,
        out_shape=jax.ShapeDtypeStruct((n_pad, D), table.dtype),
        grid_spec=pltpu.PrefetchScalarGridSpec(
            num_scalar_prefetch=1,                    # seed lands in SMEM
            grid=(grid,),
            in_specs=[
                # token-id tile for this grid step
                pl.BlockSpec((tile, 1), lambda i, seed: (i, 0)),
                # full (padded) embedding table, resident across the grid
                pl.BlockSpec((Vp, D), lambda i, seed: (0, 0)),
            ],
            out_specs=pl.BlockSpec((tile, D), lambda i, seed: (i, 0)),
        ),
        compiler_params=pltpu.CompilerParams(
            dimension_semantics=("parallel",),
            vmem_limit_bytes=vmem_limit),
    )(seed_arr, ids, table)

    return out[:N].reshape(B, L, D)


if __name__ == "__main__":
    # Module config (small, consistent with CharEmbeddings.__init__)
    vocab_size = 64
    embed_dim = 128
    drop_out_rate = 0.5

    B, L = 2, 8  # batch, char-sequence length

    key = jax.random.PRNGKey(0)
    k_tab, k_ids = jax.random.split(key)

    # Deterministic parameter init: N(0,1) like nn.Embedding, row 0 zeroed
    # because padding_idx=0.
    table = jax.random.normal(k_tab, (vocab_size, embed_dim), dtype=jnp.float32)
    table = table.at[0].set(0.0)

    # Token ids, with a couple of explicit padding (0) entries.
    words_seq = jax.random.randint(k_ids, (B, L), minval=0, maxval=vocab_size,
                                   dtype=jnp.int32)
    words_seq = words_seq.at[0, 0].set(0).at[1, L - 1].set(0)

    # --- eval-mode forward (dropout is identity), matching torch module.eval() ---
    out = char_embeddings_forward(words_seq, table,
                                  drop_rate=drop_out_rate, training=False)
    out = jax.block_until_ready(out)

    ref = table[words_seq]
    np.testing.assert_allclose(np.asarray(out), np.asarray(ref),
                               rtol=1e-6, atol=1e-6)
    assert out.shape == (B, L, embed_dim)
    # Padding rows must be exactly zero.
    np.testing.assert_array_equal(np.asarray(out[0, 0]),
                                  np.zeros(embed_dim, np.float32))

    # --- training-mode forward: inverted dropout.  Every element must be
    # either 0 (dropped) or ref / (1 - p) (kept & rescaled).
    out_t = char_embeddings_forward(words_seq, table,
                                    drop_rate=drop_out_rate, training=True,
                                    seed=1234)
    out_t = np.asarray(jax.block_until_ready(out_t))
    ref_np = np.asarray(ref)
    scaled = ref_np / (1.0 - drop_out_rate)
    ok = (np.isclose(out_t, 0.0, atol=1e-6)
          | np.isclose(out_t, scaled, rtol=1e-5, atol=1e-6))
    assert bool(np.all(ok)), "training dropout values must be 0 or ref/(1-p)"

    # Keep-fraction sanity (over non-padding, non-zero reference entries).
    nz = np.abs(ref_np) > 1e-6
    kept_frac = float(np.mean(np.abs(out_t[nz]) > 1e-7))
    assert 0.25 < kept_frac < 0.75, f"unexpected dropout keep fraction {kept_frac}"

    # TODO(synk): the training-mode dropout mask comes from an in-kernel
    # stateless hash, so the exact mask pattern differs from torch's RNG
    # stream (the keep-probability / 1/(1-p) scaling semantics match).

    print("KERNEL_OK")
</pallas_src>

<mosaic_0001>
module attributes {stable_mosaic.version = 11 : i64} {
  func.func @char_embed_kernel(%arg0: i32, %arg1: memref<1xi32, #tpu.memory_space<smem>>, %arg2: memref<16x1xi32, #tpu.memory_space<vmem>>, %arg3: memref<128x128xf32, #tpu.memory_space<vmem>>, %arg4: memref<16x128xf32, #tpu.memory_space<vmem>>) attributes {dimension_semantics = [#tpu.dimension_semantics<parallel>], iteration_bounds = array<i64: 1>, scalar_prefetch = 1 : i64, scratch_operands = 0 : i64, tpu.core_type = #tpu.core_type<tc>, window_params = [{transform_indices = @transform_0, window_bounds = array<i64: 16, 1>}, {pipeline_mode = #tpu.pipeline_mode<synchronous>, transform_indices = @transform_1, window_bounds = array<i64: 128, 128>}, {transform_indices = @transform_2, window_bounds = array<i64: 16, 128>}]} {
    %c0 = arith.constant 0 : index
    %c0_0 = arith.constant 0 : index
    %0 = vector.load %arg2[%c0, %c0_0] : memref<16x1xi32, #tpu.memory_space<vmem>>, vector<16x1xi32>
    %1 = tpu.iota {dimensions = array<i32: 1>} : vector<16x128xi32>
    %2 = vector.broadcast %0 : vector<16x1xi32> to vector<16x128xi32>
    %3 = arith.cmpi eq, %2, %1 : vector<16x128xi32>
    %4 = arith.extui %3 : vector<16x128xi1> to vector<16x128xi32>
    %5 = arith.sitofp %4 : vector<16x128xi32> to vector<16x128xf32>
    %c0_1 = arith.constant 0 : index
    %c0_2 = arith.constant 0 : index
    %6 = vector.load %arg3[%c0_1, %c0_2] : memref<128x128xf32, #tpu.memory_space<vmem>>, vector<128x128xf32>
    %cst = arith.constant dense<0.000000e+00> : vector<16x128xf32>
    %7 = tpu.matmul %5, %6, %cst {dimension_numbers = #tpu.dot_dimension_numbers<[1], [0], [0], [1], [0, 0, 1, 1], [], []>} : vector<16x128xf32>, vector<128x128xf32>, vector<16x128xf32> -> vector<16x128xf32>
    %c0_3 = arith.constant 0 : index
    %c0_4 = arith.constant 0 : index
    %8 = vector.load %arg4[%c0_3, %c0_4] : memref<16x128xf32, #tpu.memory_space<vmem>>, vector<16x128xf32>
    tpu.vector_store %arg4[%c0_3, %c0_4], %7 {strides = array<i32>} : memref<16x128xf32, #tpu.memory_space<vmem>>, vector<16x128xf32>,
    return
  }
  func.func @transform_0(%arg0: i32, %arg1: memref<1xi32, #tpu.memory_space<smem>>) -> (i32, i32) {
    %c0_i32 = arith.constant 0 : i32
    %c0_i32_0 = arith.constant 0 : i32
    return %arg0, %c0_i32 : i32, i32
  }
  func.func @transform_1(%arg0: i32, %arg1: memref<1xi32, #tpu.memory_space<smem>>) -> (i32, i32) {
    %c0_i32 = arith.constant 0 : i32
    %c0_i32_0 = arith.constant 0 : i32
    %c0_i32_1 = arith.constant 0 : i32
    return %c0_i32, %c0_i32_0 : i32, i32
  }
  func.func @transform_2(%arg0: i32, %arg1: memref<1xi32, #tpu.memory_space<smem>>) -> (i32, i32) {
    %c0_i32 = arith.constant 0 : i32
    %c0_i32_0 = arith.constant 0 : i32
    return %arg0, %c0_i32 : i32, i32
  }
}

</mosaic_0001>

<llo_original>
// kernel: tpu_custom_call.1
$region0: #{tpu_custom_call.1}
  #allocation0 [shape = 'u32[]', space=smem, size = 0x4, offset = 0x4, fixed_abs, tag = 'smem constant byte address 0x4 - core index']
  #allocation1 [shape = 'u32[144,128]{1,0:T(1,128)}', space=vmem, size = 0x12000, scoped, tag = 'internal scratch']
  #allocation2 [shape = 's32[1]{0}', space=sflag, size = 0x4, scoped, tag = 'scoped memory for tpu_custom_call.1']
  #allocation3 [shape = 's32[1]{0:T(128)S(6)}', space=smem, size = 0x200, scoped, tag = 'prefetched SMEM operand 0']
  %s0 = inlined_call_operand.<no memory space> [shape: s32[1], index: 0, kind: input, shape index: {}]
  %s1 = inlined_call_operand.vmem [shape: s32[16,1], index: 1, kind: input, shape index: {}]
  %s2 = inlined_call_operand.hbm [shape: f32[128,128], index: 2, kind: input, shape index: {}]
  %s3 = inlined_call_operand.hbm [shape: f32[16,128], index: 3, kind: output, shape index: {}]
  %s4 = sld [smem:[#allocation0]]
  $region22: #{tpu_custom_call.1} parent=0
    _
  %s6 = ssub.s32 1, %s4
  %s7 = scalar_select 0, %s6, %s4
  %8 = sst [smem:[#allocation3]] %s0
  $region1: #{tpu_custom_call.1} parent=0
    #allocation4 [shape = 'u8[65536]{0}', space=vmem, size = 0x10000, scoped, tag = 'input window, operand 2, single buffered']
    #allocation5 [shape = 's32[1]{0}', space=sflag, size = 0x4, scoped, tag = 'scoped memory for tpu_custom_call.1']
    #allocation6 [shape = 's32[1]{0}', space=sflag, size = 0x4, scoped, tag = 'scoped memory for tpu_custom_call.1']
    #allocation7 [shape = 'u8[8192]{0}', space=vmem, size = 0x2000, scoped, tag = 'output window, operand 0, single buffered']
    %9 = vsyncpa [#allocation5], 0
    %10 = vsyncpa [#allocation6], 0
    // Predicated region
    $region2: #{tpu_custom_call.1} parent=1 // pred_check
      _
    $region3: #{tpu_custom_call.1} parent=1 // pred_check_branch
      %12 = sbr.rel (0) target = $region5
    $region4: #{tpu_custom_call.1} parent=1 // pred_region
      _
    $region5: #{tpu_custom_call.1} parent=1 // pred_fallthru
      _
    // Predicated region
    $region6: #{tpu_custom_call.1} parent=1 // pred_check
      _
    $region7: #{tpu_custom_call.1} parent=1 // pred_check_branch
      %14 = sbr.rel (0) target = $region9
    $region8: #{tpu_custom_call.1} parent=1 // pred_region
      %s16 = ssub.s32 2048, 2048
      %17 = vsyncadd [#allocation5], %s16
      %s18 = sshll.u32 [#allocation4], 4
      %s19 = int_to_ptr.vmem [resolvable:$true] %s18
      %24 = dma.hbm_to_vmem [thread:$0]  %s2, 2048, %s19, [#allocation5], 128, 128, 8
    $region9: #{tpu_custom_call.1} parent=1 // pred_fallthru
      _
    // Predicated region
    $region10: #{tpu_custom_call.1} parent=1 // pred_check
      _
    $region11: #{tpu_custom_call.1} parent=1 // pred_check_branch
      %26 = sbr.rel (0) target = $region13
    $region12: #{tpu_custom_call.1} parent=1 // pred_region
      %27 = dma.done [#allocation5], 2048
    $region13: #{tpu_custom_call.1} parent=1 // pred_fallthru
      _
    %v28 = vld [vmem:[%s1] sm:$0xff]
    %v29 = vld [vmem:[%s1 + $0x8] sm:$0xff]
    %v30 = vlaneseq
    %v31 = vand.u32 %v30, 127
    %32 = vset.pattern.permute.xlu0 0
    %33 = vperm.xlu0 %32, %v28
    %v34 = vpop.permute.xlu0 %33
    %35 = vset.pattern.permute.xlu0 0
    %36 = vperm.xlu0 %35, %v29
    %v37 = vpop.permute.xlu0 %36
    %vm38 = vcmp.eq.s32.totalorder %v34, %v31
    %vm39 = vcmp.eq.s32.totalorder %v37, %v31
    %v40 = vsel %vm38, 1, 0
    %v41 = vsel %vm39, 1, 0
    %v42 = vcvt.s32.f32 %v40
    %v43 = vcvt.s32.f32 %v41
    %v44 = vld [vmem:[#allocation4] sm:$0xff]
    %v45 = vld [vmem:[#allocation4 + $0x8] sm:$0xff]
    %v46 = vld [vmem:[#allocation4 + $0x10] sm:$0xff]
    %v47 = vld [vmem:[#allocation4 + $0x18] sm:$0xff]
    %v48 = vld [vmem:[#allocation4 + $0x20] sm:$0xff]
    %v49 = vld [vmem:[#allocation4 + $0x28] sm:$0xff]
    %v50 = vld [vmem:[#allocation4 + $0x30] sm:$0xff]
    %v51 = vld [vmem:[#allocation4 + $0x38] sm:$0xff]
    %v52 = vld [vmem:[#allocation4 + $0x40] sm:$0xff]
    %v53 = vld [vmem:[#allocation4 + $0x48] sm:$0xff]
    %v54 = vld [vmem:[#allocation4 + $0x50] sm:$0xff]
    %v55 = vld [vmem:[#allocation4 + $0x58] sm:$0xff]
    %v56 = vld [vmem:[#allocation4 + $0x60] sm:$0xff]
    %v57 = vld [vmem:[#allocation4 + $0x68] sm:$0xff]
    %v58 = vld [vmem:[#allocation4 + $0x70] sm:$0xff]
    %v59 = vld [vmem:[#allocation4 + $0x78] sm:$0xff]
    %60 = vmatprep.subr.mxu0 0.0
    %61 = vmatpush1.msra.mxu0 %v44
    %62 = vmatprep.subr.mxu0 0.0
    %63 = vmatpush1.msra.mxu0 %v45
    %64 = vmatprep.subr.mxu0 0.0
    %65 = vmatpush1.msra.mxu0 %v46
    %66 = vmatprep.subr.mxu0 0.0
    %67 = vmatpush1.msra.mxu0 %v47
    %68 = vmatprep.subr.mxu0 0.0
    %69 = vmatpush1.msra.mxu0 %v48
    %70 = vmatprep.subr.mxu0 0.0
    %71 = vmatpush1.msra.mxu0 %v49
    %72 = vmatprep.subr.mxu0 0.0
    %73 = vmatpush1.msra.mxu0 %v50
    %74 = vmatprep.subr.mxu0 0.0
    %75 = vmatpush1.msra.mxu0 %v51
    %76 = vmatprep.subr.mxu0 0.0
    %77 = vmatpush1.msra.mxu0 %v52
    %78 = vmatprep.subr.mxu0 0.0
    %79 = vmatpush1.msra.mxu0 %v53
    %80 = vmatprep.subr.mxu0 0.0
    %81 = vmatpush1.msra.mxu0 %v54
    %82 = vmatprep.subr.mxu0 0.0
    %83 = vmatpush1.msra.mxu0 %v55
    %84 = vmatprep.subr.mxu0 0.0
    %85 = vmatpush1.msra.mxu0 %v56
    %86 = vmatprep.subr.mxu0 0.0
    %87 = vmatpush1.msra.mxu0 %v57
    %88 = vmatprep.subr.mxu0 0.0
    %89 = vmatpush1.msra.mxu0 %v58
    %90 = vmatprep.subr.mxu0 0.0
    %91 = vmatpush1.msra.mxu0 %v59
    %92 = vmatprep.subr.mxu0 0.0
    %93 = vmatpush1.msra.mxu0 0.0
    %94 = vmatprep.subr.mxu0 0.0
    %95 = vmatpush1.msra.mxu0 0.0
    %96 = vmatprep.subr.mxu0 0.0
    %97 = vmatpush1.msra.mxu0 0.0
    %98 = vmatprep.subr.mxu0 0.0
    %99 = vmatpush1.msra.mxu0 0.0
    %100 = vmatprep.subr.mxu0 0.0
    %101 = vmatpush1.msra.mxu0 0.0
    %102 = vmatprep.subr.mxu0 0.0
    %103 = vmatpush1.msra.mxu0 0.0
    %104 = vmatprep.subr.mxu0 0.0
    %105 = vmatpush1.msra.mxu0 0.0
    %106 = vmatprep.subr.mxu0 0.0
    %107 = vmatpush1.msra.mxu0 0.0
    %108 = vmatprep.subr.mxu0 0.0
    %109 = vmatpush1.msra.mxu0 0.0
    %110 = vmatprep.subr.mxu0 0.0
    %111 = vmatpush1.msra.mxu0 0.0
    %112 = vmatprep.subr.mxu0 0.0
    %113 = vmatpush1.msra.mxu0 0.0
    %114 = vmatprep.subr.mxu0 0.0
    %115 = vmatpush1.msra.mxu0 0.0
    %116 = vmatprep.subr.mxu0 0.0
    %117 = vmatpush1.msra.mxu0 0.0
    %118 = vmatprep.subr.mxu0 0.0
    %119 = vmatpush1.msra.mxu0 0.0
    %120 = vmatprep.subr.mxu0 0.0
    %121 = vmatpush1.msra.mxu0 0.0
    %122 = vmatprep.subr.mxu0 0.0
    %123 = vmatpush1.msra.mxu0 0.0
    %124 = vmatprep.mubr.f32.mxu0 0.0
    %125 = vmatmul.mubr.f32.gmra.mrb[0].mxu0 %v42
    %v126 = vpop.f32.mrb[0].mxu0
    %v127 = vadd.f32 0.0, %v126
    %v128 = vpop.f32.mrb[0].mxu0
    %129 = vmatprep.mubr.f32.mxu0 0.0
    %130 = vmatmul.mubr.f32.gmra.mrb[0].mxu0 %v43
    %v131 = vpop.f32.mrb[0].mxu0
    %v132 = vadd.f32 0.0, %v131
    %v133 = vpop.f32.mrb[0].mxu0
    %134 = vdwg.mxu0
    %135 = vst [vmem:[#allocation7] sm:$0xff] %v127
    %136 = vst [vmem:[#allocation7 + $0x8] sm:$0xff] %v132
    // Predicated region
    $region14: #{tpu_custom_call.1} parent=1 // pred_check
      _
    $region15: #{tpu_custom_call.1} parent=1 // pred_check_branch
      %138 = sbr.rel (0) target = $region17
    $region16: #{tpu_custom_call.1} parent=1 // pred_region
      %s140 = ssub.s32 256, 256
      %141 = vsyncadd [#allocation6], %s140
      %s142 = sshll.u32 [#allocation7], 4
      %s143 = int_to_ptr.vmem [resolvable:$true] %s142
      %148 = dma.vmem_to_hbm [thread:$0]  %s143, 256, %s3, [#allocation6], 128, 128, 8
    $region17: #{tpu_custom_call.1} parent=1 // pred_fallthru
      _
    // Predicated region
    $region18: #{tpu_custom_call.1} parent=1 // pred_check
      _
    $region19: #{tpu_custom_call.1} parent=1 // pred_check_branch
      %150 = sbr.rel (0) target = $region21
    $region20: #{tpu_custom_call.1} parent=1 // pred_region
      %151 = dma.done [#allocation6], 256
    $region21: #{tpu_custom_call.1} parent=1 // pred_fallthru
      _
    %152 = vsyncpa [#allocation5], 1
    %153 = vsyncpa [#allocation6], 1

</llo_original>
